<compile_context>
chip_gen: v6e
topology: v6e:2x2x1
jax: 0.10.0
libtpu: 0.0.40
codegen_flags: <defaults>
</compile_context>

<pallas_src>
import functools

import jax
import jax.numpy as jnp
from jax import lax
from jax.experimental import pallas as pl
from jax.experimental.pallas import tpu as pltpu


def dsnet_kernel(x_ref, wg_ref, c_ref, g_ref, o_ref, *, num_class, num_proto, nu):
    """One batch tile; batch on the lane axis.

    x_ref  : (TB, F+1)  augmented features  [x, |x|^2]
    wg_ref : (P,  F+1)  fused distance weights  [2*gamma*w, -gamma]
    c_ref  : (P,  1)    alpha * exp(-gamma * |w|^2)
    g_ref  : (C+1, P)   mass slopes: rows 0..C-1 = u^T, row C = -sum_k u
    o_ref  : (C,  TB)   class scores (lane-dense; transposed back on host)
    """
    C, P = num_class, num_proto

    x_aug = x_ref[...]                                             # (TB, F+1)
    wg = wg_ref[...]                                               # (P, F+1)
    cvec = c_ref[...]                                              # (P, 1)
    g = g_ref[...]                                                 # (C+1, P)

    # ---- DS1 + DS1_activate (fused): si = alpha * exp(-gamma * dist) ----
    # logits[p, b] = -gamma_p * (|x_b|^2 - 2 <w_p, x_b>)   (single MXU matmul)
    logits = lax.dot_general(wg, x_aug, (((1,), (1,)), ((), ())),
                             preferred_element_type=jnp.float32)   # (P, TB)
    si = cvec * jnp.exp(logits)                                    # (P, TB)
    si = si / (jnp.max(si, axis=0, keepdims=True) + 1e-4)          # exact div

    # ---- DS2 / DS2_omega: per-prototype mass vector (C+1, TB) ----
    hvec = (lax.broadcasted_iota(jnp.int32, (C + 1, 1), 0) == C).astype(jnp.float32)

    def proto_mass(i):
        # rows 0..C-1: si_i * u[i, k]   ;   row C: 1 - si_i * sum_k u[i, k]
        return g[:, i:i + 1] * si[i:i + 1, :] + hvec               # (C+1, TB)

    # ---- DS3_Dempster: sequential left-fold, register resident, unrolled ----
    m1 = proto_mass(0)
    for i in range(1, P):
        m2 = proto_mass(i)
        o1 = m1[C:C + 1, :]
        o2 = m2[C:C + 1, :]
        comb = m1 * m2 + m1 * o2 + o1 * m2                         # (C+1, TB)
        tot = jnp.sum(comb, axis=0, keepdims=True)                 # (1, TB)
        # Per-step renorm only affects the overall scale, which the exact
        # final normalisation removes -> approximate EUP reciprocal is safe.
        m1 = comb * pl.reciprocal(tot + 1e-8, approx=True)

    # ---- DS3_normalize (exact) + DM ----
    m1 = m1 / (jnp.sum(m1, axis=0, keepdims=True) + 1e-8)
    upper = (1.0 - nu) * m1[C:C + 1, :]
    o_ref[...] = (m1[0:C, :] + upper).astype(o_ref.dtype)


def dsnet_forward(x, w, xi, eta, beta, *, nu=0.9, block_b=None):
    x = x.astype(jnp.float32)
    w = w.astype(jnp.float32)
    xi = xi.astype(jnp.float32)
    eta = eta.astype(jnp.float32)
    beta = beta.astype(jnp.float32)

    B, F = x.shape
    P, C = beta.shape
    assert w.shape == (P, F) and xi.shape == (1, P) and eta.shape == (1, P)

    # ---- host-side parameter folding (hoisted out of the batch grid) ----
    gamma = eta.reshape(P, 1) ** 2                                  # (P, 1)
    alpha = 1.0 / (jnp.exp(-xi.reshape(P, 1)) + 1.0)                # (P, 1)
    w2 = jnp.sum(w * w, axis=1, keepdims=True)                      # (P, 1)
    cvec = alpha * jnp.exp(-gamma * w2)                             # (P, 1)
    wg = jnp.concatenate([2.0 * gamma * w, -gamma], axis=1)         # (P, F+1)
    beta_sq = beta * beta
    u = beta_sq / (jnp.sum(beta_sq, axis=1, keepdims=True) + 1e-8)  # (P, C)
    g = jnp.concatenate([u.T, -jnp.sum(u, axis=1)[None, :]], axis=0)  # (C+1, P)

    # ---- batch tiling: batch goes on the lane axis inside the kernel ----
    if block_b is None:
        block_b = 512 if B >= 512 else (256 if B >= 256 else 128)
    bp = ((B + block_b - 1) // block_b) * block_b
    x2 = jnp.sum(x * x, axis=1, keepdims=True)                      # (B, 1)
    x_aug = jnp.concatenate([x, x2], axis=1)                        # (B, F+1)
    if bp != B:
        x_aug = jnp.pad(x_aug, ((0, bp - B), (0, 0)))

    kernel = functools.partial(dsnet_kernel, num_class=int(C),
                               num_proto=int(P), nu=float(nu))
    out_t = pl.pallas_call(
        kernel,
        out_shape=jax.ShapeDtypeStruct((C, bp), jnp.float32),
        grid=(bp // block_b,),
        in_specs=[
            pl.BlockSpec((block_b, F + 1), lambda i: (i, 0)),   # x tiles (pipelined)
            pl.BlockSpec((P, F + 1), lambda i: (0, 0)),         # resident params
            pl.BlockSpec((P, 1), lambda i: (0, 0)),
            pl.BlockSpec((C + 1, P), lambda i: (0, 0)),
        ],
        out_specs=pl.BlockSpec((C, block_b), lambda i: (0, i)),
        compiler_params=pltpu.CompilerParams(
            dimension_semantics=("parallel",)),
    )(x_aug, wg, cvec, g)

    return out_t[:, :B].T                                           # (B, C)


def dsnet_reference(x, w, xi, eta, beta, *, nu=0.9):
    """Plain-JAX transcription of the PyTorch forward (for verification)."""
    P = w.shape[0]
    # DS1
    dist = jnp.sum((w[None, :, :] - x[:, None, :]) ** 2, axis=-1)   # (B, P)
    # DS1_activate
    gamma = eta ** 2
    alpha = 1.0 / (jnp.exp(-xi) + 1.0)
    si = alpha * jnp.exp(-gamma * dist)
    si = si / (jnp.max(si, axis=-1, keepdims=True) + 0.0001)
    # DS2
    beta_sq = beta ** 2
    u = beta_sq / (jnp.sum(beta_sq, axis=-1, keepdims=True) + 1e-8)
    mass = si[:, :, None] * u[None, :, :]                           # (B, P, C)
    # DS2_omega
    omega = 1.0 - jnp.sum(mass, axis=-1, keepdims=True)
    m = jnp.concatenate([mass, omega], axis=-1)                     # (B, P, C+1)
    # DS3_Dempster
    m1 = m[:, 0, :]
    for i in range(1, P):
        m2 = m[:, i, :]
        o1 = m1[:, -1:]
        o2 = m2[:, -1:]
        comb = m1 * m2 + m1 * o2 + o1 * m2
        m1 = comb / (jnp.sum(comb, axis=-1, keepdims=True) + 1e-8)
    # DS3_normalize
    m1 = m1 / (jnp.sum(m1, axis=-1, keepdims=True) + 1e-8)
    # DM
    upper = (1.0 - nu) * m1[:, -1:]
    out = m1 + upper
    return out[:, :-1]


if __name__ == "__main__":
    # Small shapes consistent with DSNet(prototypes, num_class, n_features):
    B, F, P, C = 8, 32, 16, 4
    NU = 0.9

    key = jax.random.PRNGKey(0)
    kx, kw, kxi, keta, kbeta = jax.random.split(key, 5)

    x = jax.random.normal(kx, (B, F), dtype=jnp.float32)
    # Deterministic param init mirroring torch.randn(...) * 0.05
    w = 0.05 * jax.random.normal(kw, (P, F), dtype=jnp.float32)
    xi = 0.05 * jax.random.normal(kxi, (1, P), dtype=jnp.float32)
    eta = 0.05 * jax.random.normal(keta, (1, P), dtype=jnp.float32)
    beta = 0.05 * jax.random.normal(kbeta, (P, C), dtype=jnp.float32)

    out = dsnet_forward(x, w, xi, eta, beta, nu=NU)
    out = jax.block_until_ready(out)

    ref = dsnet_reference(x, w, xi, eta, beta, nu=NU)
    assert out.shape == (B, C), out.shape
    assert jnp.all(jnp.isfinite(out))
    assert jnp.allclose(out, ref, rtol=1e-3, atol=1e-3), (
        f"max abs err {jnp.max(jnp.abs(out - ref))}")

    print("KERNEL_OK")
</pallas_src>

<mosaic_0001>
module attributes {stable_mosaic.version = 11 : i64} {
  func.func @dsnet_kernel(%arg0: i32, %arg1: memref<128x33xf32, #tpu.memory_space<vmem>>, %arg2: memref<16x33xf32, #tpu.memory_space<vmem>>, %arg3: memref<16x1xf32, #tpu.memory_space<vmem>>, %arg4: memref<5x16xf32, #tpu.memory_space<vmem>>, %arg5: memref<4x128xf32, #tpu.memory_space<vmem>>) attributes {dimension_semantics = [#tpu.dimension_semantics<parallel>], iteration_bounds = array<i64: 1>, scalar_prefetch = 0 : i64, scratch_operands = 0 : i64, tpu.core_type = #tpu.core_type<tc>, window_params = [{transform_indices = @transform_0, window_bounds = array<i64: 128, 33>}, {pipeline_mode = #tpu.pipeline_mode<synchronous>, transform_indices = @transform_1, window_bounds = array<i64: 16, 33>}, {pipeline_mode = #tpu.pipeline_mode<synchronous>, transform_indices = @transform_2, window_bounds = array<i64: 16, 1>}, {pipeline_mode = #tpu.pipeline_mode<synchronous>, transform_indices = @transform_3, window_bounds = array<i64: 5, 16>}, {transform_indices = @transform_4, window_bounds = array<i64: 4, 128>}]} {
    %c0 = arith.constant 0 : index
    %c0_0 = arith.constant 0 : index
    %0 = vector.load %arg1[%c0, %c0_0] : memref<128x33xf32, #tpu.memory_space<vmem>>, vector<128x33xf32>
    %c0_1 = arith.constant 0 : index
    %c0_2 = arith.constant 0 : index
    %1 = vector.load %arg2[%c0_1, %c0_2] : memref<16x33xf32, #tpu.memory_space<vmem>>, vector<16x33xf32>
    %c0_3 = arith.constant 0 : index
    %c0_4 = arith.constant 0 : index
    %2 = vector.load %arg3[%c0_3, %c0_4] : memref<16x1xf32, #tpu.memory_space<vmem>>, vector<16x1xf32>
    %c0_5 = arith.constant 0 : index
    %c0_6 = arith.constant 0 : index
    %3 = vector.load %arg4[%c0_5, %c0_6] : memref<5x16xf32, #tpu.memory_space<vmem>>, vector<5x16xf32>
    %cst = arith.constant dense<0.000000e+00> : vector<16x128xf32>
    %4 = tpu.matmul %1, %0, %cst {dimension_numbers = #tpu.dot_dimension_numbers<[1], [1], [0], [0], [0, 0, 1, 0], [], []>} : vector<16x33xf32>, vector<128x33xf32>, vector<16x128xf32> -> vector<16x128xf32>
    %5 = math.exp %4 : vector<16x128xf32>
    %6 = vector.broadcast %2 : vector<16x1xf32> to vector<16x128xf32>
    %7 = arith.mulf %6, %5 : vector<16x128xf32>
    %cst_7 = arith.constant dense<0xFF800000> : vector<128xf32>
    %8 = vector.multi_reduction <maximumf>, %7, %cst_7 [0] : vector<16x128xf32> to vector<128xf32>
    %9 = vector.shape_cast %8 : vector<128xf32> to vector<1x128xf32>
    %cst_8 = arith.constant 9.99999974E-5 : f32
    %10 = vector.broadcast %cst_8 : f32 to vector<1x128xf32>
    %11 = arith.addf %9, %10 : vector<1x128xf32>
    %12 = vector.broadcast %11 : vector<1x128xf32> to vector<16x128xf32>
    %13 = arith.divf %7, %12 : vector<16x128xf32>
    %14 = tpu.iota {dimensions = array<i32: 0>} : vector<5x1xi32>
    %c4_i32 = arith.constant 4 : i32
    %15 = vector.broadcast %c4_i32 : i32 to vector<5x1xi32>
    %16 = arith.cmpi eq, %14, %15 : vector<5x1xi32>
    %17 = arith.extui %16 : vector<5x1xi1> to vector<5x1xi32>
    %18 = arith.sitofp %17 : vector<5x1xi32> to vector<5x1xf32>
    %19 = vector.extract_strided_slice %3 {offsets = [0, 0], sizes = [5, 1], strides = [1, 1]} : vector<5x16xf32> to vector<5x1xf32>
    %20 = vector.extract_strided_slice %13 {offsets = [0, 0], sizes = [1, 128], strides = [1, 1]} : vector<16x128xf32> to vector<1x128xf32>
    %21 = vector.broadcast %19 : vector<5x1xf32> to vector<5x128xf32>
    %22 = vector.broadcast %20 : vector<1x128xf32> to vector<5x128xf32>
    %23 = arith.mulf %21, %22 : vector<5x128xf32>
    %24 = vector.broadcast %18 : vector<5x1xf32> to vector<5x128xf32>
    %25 = arith.addf %23, %24 : vector<5x128xf32>
    %26 = vector.extract_strided_slice %3 {offsets = [0, 1], sizes = [5, 1], strides = [1, 1]} : vector<5x16xf32> to vector<5x1xf32>
    %27 = vector.extract_strided_slice %13 {offsets = [1, 0], sizes = [1, 128], strides = [1, 1]} : vector<16x128xf32> to vector<1x128xf32>
    %28 = vector.broadcast %26 : vector<5x1xf32> to vector<5x128xf32>
    %29 = vector.broadcast %27 : vector<1x128xf32> to vector<5x128xf32>
    %30 = arith.mulf %28, %29 : vector<5x128xf32>
    %31 = vector.broadcast %18 : vector<5x1xf32> to vector<5x128xf32>
    %32 = arith.addf %30, %31 : vector<5x128xf32>
    %33 = vector.extract_strided_slice %25 {offsets = [4, 0], sizes = [1, 128], strides = [1, 1]} : vector<5x128xf32> to vector<1x128xf32>
    %34 = vector.extract_strided_slice %32 {offsets = [4, 0], sizes = [1, 128], strides = [1, 1]} : vector<5x128xf32> to vector<1x128xf32>
    %35 = arith.mulf %25, %32 : vector<5x128xf32>
    %36 = vector.broadcast %34 : vector<1x128xf32> to vector<5x128xf32>
    %37 = arith.mulf %25, %36 : vector<5x128xf32>
    %38 = arith.addf %35, %37 : vector<5x128xf32>
    %39 = vector.broadcast %33 : vector<1x128xf32> to vector<5x128xf32>
    %40 = arith.mulf %39, %32 : vector<5x128xf32>
    %41 = arith.addf %38, %40 : vector<5x128xf32>
    %cst_9 = arith.constant dense<0.000000e+00> : vector<128xf32>
    %42 = vector.multi_reduction <add>, %41, %cst_9 [0] : vector<5x128xf32> to vector<128xf32>
    %43 = vector.shape_cast %42 : vector<128xf32> to vector<1x128xf32>
    %cst_10 = arith.constant 9.99999993E-9 : f32
    %44 = vector.broadcast %cst_10 : f32 to vector<1x128xf32>
    %45 = arith.addf %43, %44 : vector<1x128xf32>
    %46 = tpu.reciprocal %45 {approx = true} : vector<1x128xf32> -> vector<1x128xf32>
    %47 = vector.broadcast %46 : vector<1x128xf32> to vector<5x128xf32>
    %48 = arith.mulf %41, %47 : vector<5x128xf32>
    %49 = vector.extract_strided_slice %3 {offsets = [0, 2], sizes = [5, 1], strides = [1, 1]} : vector<5x16xf32> to vector<5x1xf32>
    %50 = vector.extract_strided_slice %13 {offsets = [2, 0], sizes = [1, 128], strides = [1, 1]} : vector<16x128xf32> to vector<1x128xf32>
    %51 = vector.broadcast %49 : vector<5x1xf32> to vector<5x128xf32>
    %52 = vector.broadcast %50 : vector<1x128xf32> to vector<5x128xf32>
    %53 = arith.mulf %51, %52 : vector<5x128xf32>
    %54 = vector.broadcast %18 : vector<5x1xf32> to vector<5x128xf32>
    %55 = arith.addf %53, %54 : vector<5x128xf32>
    %56 = vector.extract_strided_slice %48 {offsets = [4, 0], sizes = [1, 128], strides = [1, 1]} : vector<5x128xf32> to vector<1x128xf32>
    %57 = vector.extract_strided_slice %55 {offsets = [4, 0], sizes = [1, 128], strides = [1, 1]} : vector<5x128xf32> to vector<1x128xf32>
    %58 = arith.mulf %48, %55 : vector<5x128xf32>
    %59 = vector.broadcast %57 : vector<1x128xf32> to vector<5x128xf32>
    %60 = arith.mulf %48, %59 : vector<5x128xf32>
    %61 = arith.addf %58, %60 : vector<5x128xf32>
    %62 = vector.broadcast %56 : vector<1x128xf32> to vector<5x128xf32>
    %63 = arith.mulf %62, %55 : vector<5x128xf32>
    %64 = arith.addf %61, %63 : vector<5x128xf32>
    %cst_11 = arith.constant dense<0.000000e+00> : vector<128xf32>
    %65 = vector.multi_reduction <add>, %64, %cst_11 [0] : vector<5x128xf32> to vector<128xf32>
    %66 = vector.shape_cast %65 : vector<128xf32> to vector<1x128xf32>
    %cst_12 = arith.constant 9.99999993E-9 : f32
    %67 = vector.broadcast %cst_12 : f32 to vector<1x128xf32>
    %68 = arith.addf %66, %67 : vector<1x128xf32>
    %69 = tpu.reciprocal %68 {approx = true} : vector<1x128xf32> -> vector<1x128xf32>
    %70 = vector.broadcast %69 : vector<1x128xf32> to vector<5x128xf32>
    %71 = arith.mulf %64, %70 : vector<5x128xf32>
    %72 = vector.extract_strided_slice %3 {offsets = [0, 3], sizes = [5, 1], strides = [1, 1]} : vector<5x16xf32> to vector<5x1xf32>
    %73 = vector.extract_strided_slice %13 {offsets = [3, 0], sizes = [1, 128], strides = [1, 1]} : vector<16x128xf32> to vector<1x128xf32>
    %74 = vector.broadcast %72 : vector<5x1xf32> to vector<5x128xf32>
    %75 = vector.broadcast %73 : vector<1x128xf32> to vector<5x128xf32>
    %76 = arith.mulf %74, %75 : vector<5x128xf32>
    %77 = vector.broadcast %18 : vector<5x1xf32> to vector<5x128xf32>
    %78 = arith.addf %76, %77 : vector<5x128xf32>
    %79 = vector.extract_strided_slice %71 {offsets = [4, 0], sizes = [1, 128], strides = [1, 1]} : vector<5x128xf32> to vector<1x128xf32>
    %80 = vector.extract_strided_slice %78 {offsets = [4, 0], sizes = [1, 128], strides = [1, 1]} : vector<5x128xf32> to vector<1x128xf32>
    %81 = arith.mulf %71, %78 : vector<5x128xf32>
    %82 = vector.broadcast %80 : vector<1x128xf32> to vector<5x128xf32>
    %83 = arith.mulf %71, %82 : vector<5x128xf32>
    %84 = arith.addf %81, %83 : vector<5x128xf32>
    %85 = vector.broadcast %79 : vector<1x128xf32> to vector<5x128xf32>
    %86 = arith.mulf %85, %78 : vector<5x128xf32>
    %87 = arith.addf %84, %86 : vector<5x128xf32>
    %cst_13 = arith.constant dense<0.000000e+00> : vector<128xf32>
    %88 = vector.multi_reduction <add>, %87, %cst_13 [0] : vector<5x128xf32> to vector<128xf32>
    %89 = vector.shape_cast %88 : vector<128xf32> to vector<1x128xf32>
    %cst_14 = arith.constant 9.99999993E-9 : f32
    %90 = vector.broadcast %cst_14 : f32 to vector<1x128xf32>
    %91 = arith.addf %89, %90 : vector<1x128xf32>
    %92 = tpu.reciprocal %91 {approx = true} : vector<1x128xf32> -> vector<1x128xf32>
    %93 = vector.broadcast %92 : vector<1x128xf32> to vector<5x128xf32>
    %94 = arith.mulf %87, %93 : vector<5x128xf32>
    %95 = vector.extract_strided_slice %3 {offsets = [0, 4], sizes = [5, 1], strides = [1, 1]} : vector<5x16xf32> to vector<5x1xf32>
    %96 = vector.extract_strided_slice %13 {offsets = [4, 0], sizes = [1, 128], strides = [1, 1]} : vector<16x128xf32> to vector<1x128xf32>
    %97 = vector.broadcast %95 : vector<5x1xf32> to vector<5x128xf32>
    %98 = vector.broadcast %96 : vector<1x128xf32> to vector<5x128xf32>
    %99 = arith.mulf %97, %98 : vector<5x128xf32>
    %100 = vector.broadcast %18 : vector<5x1xf32> to vector<5x128xf32>
    %101 = arith.addf %99, %100 : vector<5x128xf32>
    %102 = vector.extract_strided_slice %94 {offsets = [4, 0], sizes = [1, 128], strides = [1, 1]} : vector<5x128xf32> to vector<1x128xf32>
    %103 = vector.extract_strided_slice %101 {offsets = [4, 0], sizes = [1, 128], strides = [1, 1]} : vector<5x128xf32> to vector<1x128xf32>
    %104 = arith.mulf %94, %101 : vector<5x128xf32>
    %105 = vector.broadcast %103 : vector<1x128xf32> to vector<5x128xf32>
    %106 = arith.mulf %94, %105 : vector<5x128xf32>
    %107 = arith.addf %104, %106 : vector<5x128xf32>
    %108 = vector.broadcast %102 : vector<1x128xf32> to vector<5x128xf32>
    %109 = arith.mulf %108, %101 : vector<5x128xf32>
    %110 = arith.addf %107, %109 : vector<5x128xf32>
    %cst_15 = arith.constant dense<0.000000e+00> : vector<128xf32>
    %111 = vector.multi_reduction <add>, %110, %cst_15 [0] : vector<5x128xf32> to vector<128xf32>
    %112 = vector.shape_cast %111 : vector<128xf32> to vector<1x128xf32>
    %cst_16 = arith.constant 9.99999993E-9 : f32
    %113 = vector.broadcast %cst_16 : f32 to vector<1x128xf32>
    %114 = arith.addf %112, %113 : vector<1x128xf32>
    %115 = tpu.reciprocal %114 {approx = true} : vector<1x128xf32> -> vector<1x128xf32>
    %116 = vector.broadcast %115 : vector<1x128xf32> to vector<5x128xf32>
    %117 = arith.mulf %110, %116 : vector<5x128xf32>
    %118 = vector.extract_strided_slice %3 {offsets = [0, 5], sizes = [5, 1], strides = [1, 1]} : vector<5x16xf32> to vector<5x1xf32>
    %119 = vector.extract_strided_slice %13 {offsets = [5, 0], sizes = [1, 128], strides = [1, 1]} : vector<16x128xf32> to vector<1x128xf32>
    %120 = vector.broadcast %118 : vector<5x1xf32> to vector<5x128xf32>
    %121 = vector.broadcast %119 : vector<1x128xf32> to vector<5x128xf32>
    %122 = arith.mulf %120, %121 : vector<5x128xf32>
    %123 = vector.broadcast %18 : vector<5x1xf32> to vector<5x128xf32>
    %124 = arith.addf %122, %123 : vector<5x128xf32>
    %125 = vector.extract_strided_slice %117 {offsets = [4, 0], sizes = [1, 128], strides = [1, 1]} : vector<5x128xf32> to vector<1x128xf32>
    %126 = vector.extract_strided_slice %124 {offsets = [4, 0], sizes = [1, 128], strides = [1, 1]} : vector<5x128xf32> to vector<1x128xf32>
    %127 = arith.mulf %117, %124 : vector<5x128xf32>
    %128 = vector.broadcast %126 : vector<1x128xf32> to vector<5x128xf32>
    %129 = arith.mulf %117, %128 : vector<5x128xf32>
    %130 = arith.addf %127, %129 : vector<5x128xf32>
    %131 = vector.broadcast %125 : vector<1x128xf32> to vector<5x128xf32>
    %132 = arith.mulf %131, %124 : vector<5x128xf32>
    %133 = arith.addf %130, %132 : vector<5x128xf32>
    %cst_17 = arith.constant dense<0.000000e+00> : vector<128xf32>
    %134 = vector.multi_reduction <add>, %133, %cst_17 [0] : vector<5x128xf32> to vector<128xf32>
    %135 = vector.shape_cast %134 : vector<128xf32> to vector<1x128xf32>
    %cst_18 = arith.constant 9.99999993E-9 : f32
    %136 = vector.broadcast %cst_18 : f32 to vector<1x128xf32>
    %137 = arith.addf %135, %136 : vector<1x128xf32>
    %138 = tpu.reciprocal %137 {approx = true} : vector<1x128xf32> -> vector<1x128xf32>
    %139 = vector.broadcast %138 : vector<1x128xf32> to vector<5x128xf32>
    %140 = arith.mulf %133, %139 : vector<5x128xf32>
    %141 = vector.extract_strided_slice %3 {offsets = [0, 6], sizes = [5, 1], strides = [1, 1]} : vector<5x16xf32> to vector<5x1xf32>
    %142 = vector.extract_strided_slice %13 {offsets = [6, 0], sizes = [1, 128], strides = [1, 1]} : vector<16x128xf32> to vector<1x128xf32>
    %143 = vector.broadcast %141 : vector<5x1xf32> to vector<5x128xf32>
    %144 = vector.broadcast %142 : vector<1x128xf32> to vector<5x128xf32>
    %145 = arith.mulf %143, %144 : vector<5x128xf32>
    %146 = vector.broadcast %18 : vector<5x1xf32> to vector<5x128xf32>
    %147 = arith.addf %145, %146 : vector<5x128xf32>
    %148 = vector.extract_strided_slice %140 {offsets = [4, 0], sizes = [1, 128], strides = [1, 1]} : vector<5x128xf32> to vector<1x128xf32>
    %149 = vector.extract_strided_slice %147 {offsets = [4, 0], sizes = [1, 128], strides = [1, 1]} : vector<5x128xf32> to vector<1x128xf32>
    %150 = arith.mulf %140, %147 : vector<5x128xf32>
    %151 = vector.broadcast %149 : vector<1x128xf32> to vector<5x128xf32>
    %152 = arith.mulf %140, %151 : vector<5x128xf32>
    %153 = arith.addf %150, %152 : vector<5x128xf32>
    %154 = vector.broadcast %148 : vector<1x128xf32> to vector<5x128xf32>
    %155 = arith.mulf %154, %147 : vector<5x128xf32>
    %156 = arith.addf %153, %155 : vector<5x128xf32>
    %cst_19 = arith.constant dense<0.000000e+00> : vector<128xf32>
    %157 = vector.multi_reduction <add>, %156, %cst_19 [0] : vector<5x128xf32> to vector<128xf32>
    %158 = vector.shape_cast %157 : vector<128xf32> to vector<1x128xf32>
    %cst_20 = arith.constant 9.99999993E-9 : f32
    %159 = vector.broadcast %cst_20 : f32 to vector<1x128xf32>
    %160 = arith.addf %158, %159 : vector<1x128xf32>
    %161 = tpu.reciprocal %160 {approx = true} : vector<1x128xf32> -> vector<1x128xf32>
    %162 = vector.broadcast %161 : vector<1x128xf32> to vector<5x128xf32>
    %163 = arith.mulf %156, %162 : vector<5x128xf32>
    %164 = vector.extract_strided_slice %3 {offsets = [0, 7], sizes = [5, 1], strides = [1, 1]} : vector<5x16xf32> to vector<5x1xf32>
    %165 = vector.extract_strided_slice %13 {offsets = [7, 0], sizes = [1, 128], strides = [1, 1]} : vector<16x128xf32> to vector<1x128xf32>
    %166 = vector.broadcast %164 : vector<5x1xf32> to vector<5x128xf32>
    %167 = vector.broadcast %165 : vector<1x128xf32> to vector<5x128xf32>
    %168 = arith.mulf %166, %167 : vector<5x128xf32>
    %169 = vector.broadcast %18 : vector<5x1xf32> to vector<5x128xf32>
    %170 = arith.addf %168, %169 : vector<5x128xf32>
    %171 = vector.extract_strided_slice %163 {offsets = [4, 0], sizes = [1, 128], strides = [1, 1]} : vector<5x128xf32> to vector<1x128xf32>
    %172 = vector.extract_strided_slice %170 {offsets = [4, 0], sizes = [1, 128], strides = [1, 1]} : vector<5x128xf32> to vector<1x128xf32>
    %173 = arith.mulf %163, %170 : vector<5x128xf32>
    %174 = vector.broadcast %172 : vector<1x128xf32> to vector<5x128xf32>
    %175 = arith.mulf %163, %174 : vector<5x128xf32>
    %176 = arith.addf %173, %175 : vector<5x128xf32>
    %177 = vector.broadcast %171 : vector<1x128xf32> to vector<5x128xf32>
    %178 = arith.mulf %177, %170 : vector<5x128xf32>
    %179 = arith.addf %176, %178 : vector<5x128xf32>
    %cst_21 = arith.constant dense<0.000000e+00> : vector<128xf32>
    %180 = vector.multi_reduction <add>, %179, %cst_21 [0] : vector<5x128xf32> to vector<128xf32>
    %181 = vector.shape_cast %180 : vector<128xf32> to vector<1x128xf32>
    %cst_22 = arith.constant 9.99999993E-9 : f32
    %182 = vector.broadcast %cst_22 : f32 to vector<1x128xf32>
    %183 = arith.addf %181, %182 : vector<1x128xf32>
    %184 = tpu.reciprocal %183 {approx = true} : vector<1x128xf32> -> vector<1x128xf32>
    %185 = vector.broadcast %184 : vector<1x128xf32> to vector<5x128xf32>
    %186 = arith.mulf %179, %185 : vector<5x128xf32>
    %187 = vector.extract_strided_slice %3 {offsets = [0, 8], sizes = [5, 1], strides = [1, 1]} : vector<5x16xf32> to vector<5x1xf32>
    %188 = vector.extract_strided_slice %13 {offsets = [8, 0], sizes = [1, 128], strides = [1, 1]} : vector<16x128xf32> to vector<1x128xf32>
    %189 = vector.broadcast %187 : vector<5x1xf32> to vector<5x128xf32>
    %190 = vector.broadcast %188 : vector<1x128xf32> to vector<5x128xf32>
    %191 = arith.mulf %189, %190 : vector<5x128xf32>
    %192 = vector.broadcast %18 : vector<5x1xf32> to vector<5x128xf32>
    %193 = arith.addf %191, %192 : vector<5x128xf32>
    %194 = vector.extract_strided_slice %186 {offsets = [4, 0], sizes = [1, 128], strides = [1, 1]} : vector<5x128xf32> to vector<1x128xf32>
    %195 = vector.extract_strided_slice %193 {offsets = [4, 0], sizes = [1, 128], strides = [1, 1]} : vector<5x128xf32> to vector<1x128xf32>
    %196 = arith.mulf %186, %193 : vector<5x128xf32>
    %197 = vector.broadcast %195 : vector<1x128xf32> to vector<5x128xf32>
    %198 = arith.mulf %186, %197 : vector<5x128xf32>
    %199 = arith.addf %196, %198 : vector<5x128xf32>
    %200 = vector.broadcast %194 : vector<1x128xf32> to vector<5x128xf32>
    %201 = arith.mulf %200, %193 : vector<5x128xf32>
    %202 = arith.addf %199, %201 : vector<5x128xf32>
    %cst_23 = arith.constant dense<0.000000e+00> : vector<128xf32>
    %203 = vector.multi_reduction <add>, %202, %cst_23 [0] : vector<5x128xf32> to vector<128xf32>
    %204 = vector.shape_cast %203 : vector<128xf32> to vector<1x128xf32>
    %cst_24 = arith.constant 9.99999993E-9 : f32
    %205 = vector.broadcast %cst_24 : f32 to vector<1x128xf32>
    %206 = arith.addf %204, %205 : vector<1x128xf32>
    %207 = tpu.reciprocal %206 {approx = true} : vector<1x128xf32> -> vector<1x128xf32>
    %208 = vector.broadcast %207 : vector<1x128xf32> to vector<5x128xf32>
    %209 = arith.mulf %202, %208 : vector<5x128xf32>
    %210 = vector.extract_strided_slice %3 {offsets = [0, 9], sizes = [5, 1], strides = [1, 1]} : vector<5x16xf32> to vector<5x1xf32>
    %211 = vector.extract_strided_slice %13 {offsets = [9, 0], sizes = [1, 128], strides = [1, 1]} : vector<16x128xf32> to vector<1x128xf32>
    %212 = vector.broadcast %210 : vector<5x1xf32> to vector<5x128xf32>
    %213 = vector.broadcast %211 : vector<1x128xf32> to vector<5x128xf32>
    %214 = arith.mulf %212, %213 : vector<5x128xf32>
    %215 = vector.broadcast %18 : vector<5x1xf32> to vector<5x128xf32>
    %216 = arith.addf %214, %215 : vector<5x128xf32>
    %217 = vector.extract_strided_slice %209 {offsets = [4, 0], sizes = [1, 128], strides = [1, 1]} : vector<5x128xf32> to vector<1x128xf32>
    %218 = vector.extract_strided_slice %216 {offsets = [4, 0], sizes = [1, 128], strides = [1, 1]} : vector<5x128xf32> to vector<1x128xf32>
    %219 = arith.mulf %209, %216 : vector<5x128xf32>
    %220 = vector.broadcast %218 : vector<1x128xf32> to vector<5x128xf32>
    %221 = arith.mulf %209, %220 : vector<5x128xf32>
    %222 = arith.addf %219, %221 : vector<5x128xf32>
    %223 = vector.broadcast %217 : vector<1x128xf32> to vector<5x128xf32>
    %224 = arith.mulf %223, %216 : vector<5x128xf32>
    %225 = arith.addf %222, %224 : vector<5x128xf32>
    %cst_25 = arith.constant dense<0.000000e+00> : vector<128xf32>
    %226 = vector.multi_reduction <add>, %225, %cst_25 [0] : vector<5x128xf32> to vector<128xf32>
    %227 = vector.shape_cast %226 : vector<128xf32> to vector<1x128xf32>
    %cst_26 = arith.constant 9.99999993E-9 : f32
    %228 = vector.broadcast %cst_26 : f32 to vector<1x128xf32>
    %229 = arith.addf %227, %228 : vector<1x128xf32>
    %230 = tpu.reciprocal %229 {approx = true} : vector<1x128xf32> -> vector<1x128xf32>
    %231 = vector.broadcast %230 : vector<1x128xf32> to vector<5x128xf32>
    %232 = arith.mulf %225, %231 : vector<5x128xf32>
    %233 = vector.extract_strided_slice %3 {offsets = [0, 10], sizes = [5, 1], strides = [1, 1]} : vector<5x16xf32> to vector<5x1xf32>
    %234 = vector.extract_strided_slice %13 {offsets = [10, 0], sizes = [1, 128], strides = [1, 1]} : vector<16x128xf32> to vector<1x128xf32>
    %235 = vector.broadcast %233 : vector<5x1xf32> to vector<5x128xf32>
    %236 = vector.broadcast %234 : vector<1x128xf32> to vector<5x128xf32>
    %237 = arith.mulf %235, %236 : vector<5x128xf32>
    %238 = vector.broadcast %18 : vector<5x1xf32> to vector<5x128xf32>
    %239 = arith.addf %237, %238 : vector<5x128xf32>
    %240 = vector.extract_strided_slice %232 {offsets = [4, 0], sizes = [1, 128], strides = [1, 1]} : vector<5x128xf32> to vector<1x128xf32>
    %241 = vector.extract_strided_slice %239 {offsets = [4, 0], sizes = [1, 128], strides = [1, 1]} : vector<5x128xf32> to vector<1x128xf32>
    %242 = arith.mulf %232, %239 : vector<5x128xf32>
    %243 = vector.broadcast %241 : vector<1x128xf32> to vector<5x128xf32>
    %244 = arith.mulf %232, %243 : vector<5x128xf32>
    %245 = arith.addf %242, %244 : vector<5x128xf32>
    %246 = vector.broadcast %240 : vector<1x128xf32> to vector<5x128xf32>
    %247 = arith.mulf %246, %239 : vector<5x128xf32>
    %248 = arith.addf %245, %247 : vector<5x128xf32>
    %cst_27 = arith.constant dense<0.000000e+00> : vector<128xf32>
    %249 = vector.multi_reduction <add>, %248, %cst_27 [0] : vector<5x128xf32> to vector<128xf32>
    %250 = vector.shape_cast %249 : vector<128xf32> to vector<1x128xf32>
    %cst_28 = arith.constant 9.99999993E-9 : f32
    %251 = vector.broadcast %cst_28 : f32 to vector<1x128xf32>
    %252 = arith.addf %250, %251 : vector<1x128xf32>
    %253 = tpu.reciprocal %252 {approx = true} : vector<1x128xf32> -> vector<1x128xf32>
    %254 = vector.broadcast %253 : vector<1x128xf32> to vector<5x128xf32>
    %255 = arith.mulf %248, %254 : vector<5x128xf32>
    %256 = vector.extract_strided_slice %3 {offsets = [0, 11], sizes = [5, 1], strides = [1, 1]} : vector<5x16xf32> to vector<5x1xf32>
    %257 = vector.extract_strided_slice %13 {offsets = [11, 0], sizes = [1, 128], strides = [1, 1]} : vector<16x128xf32> to vector<1x128xf32>
    %258 = vector.broadcast %256 : vector<5x1xf32> to vector<5x128xf32>
    %259 = vector.broadcast %257 : vector<1x128xf32> to vector<5x128xf32>
    %260 = arith.mulf %258, %259 : vector<5x128xf32>
    %261 = vector.broadcast %18 : vector<5x1xf32> to vector<5x128xf32>
    %262 = arith.addf %260, %261 : vector<5x128xf32>
    %263 = vector.extract_strided_slice %255 {offsets = [4, 0], sizes = [1, 128], strides = [1, 1]} : vector<5x128xf32> to vector<1x128xf32>
    %264 = vector.extract_strided_slice %262 {offsets = [4, 0], sizes = [1, 128], strides = [1, 1]} : vector<5x128xf32> to vector<1x128xf32>
    %265 = arith.mulf %255, %262 : vector<5x128xf32>
    %266 = vector.broadcast %264 : vector<1x128xf32> to vector<5x128xf32>
    %267 = arith.mulf %255, %266 : vector<5x128xf32>
    %268 = arith.addf %265, %267 : vector<5x128xf32>
    %269 = vector.broadcast %263 : vector<1x128xf32> to vector<5x128xf32>
    %270 = arith.mulf %269, %262 : vector<5x128xf32>
    %271 = arith.addf %268, %270 : vector<5x128xf32>
    %cst_29 = arith.constant dense<0.000000e+00> : vector<128xf32>
    %272 = vector.multi_reduction <add>, %271, %cst_29 [0] : vector<5x128xf32> to vector<128xf32>
    %273 = vector.shape_cast %272 : vector<128xf32> to vector<1x128xf32>
    %cst_30 = arith.constant 9.99999993E-9 : f32
    %274 = vector.broadcast %cst_30 : f32 to vector<1x128xf32>
    %275 = arith.addf %273, %274 : vector<1x128xf32>
    %276 = tpu.reciprocal %275 {approx = true} : vector<1x128xf32> -> vector<1x128xf32>
    %277 = vector.broadcast %276 : vector<1x128xf32> to vector<5x128xf32>
    %278 = arith.mulf %271, %277 : vector<5x128xf32>
    %279 = vector.extract_strided_slice %3 {offsets = [0, 12], sizes = [5, 1], strides = [1, 1]} : vector<5x16xf32> to vector<5x1xf32>
    %280 = vector.extract_strided_slice %13 {offsets = [12, 0], sizes = [1, 128], strides = [1, 1]} : vector<16x128xf32> to vector<1x128xf32>
    %281 = vector.broadcast %279 : vector<5x1xf32> to vector<5x128xf32>
    %282 = vector.broadcast %280 : vector<1x128xf32> to vector<5x128xf32>
    %283 = arith.mulf %281, %282 : vector<5x128xf32>
    %284 = vector.broadcast %18 : vector<5x1xf32> to vector<5x128xf32>
    %285 = arith.addf %283, %284 : vector<5x128xf32>
    %286 = vector.extract_strided_slice %278 {offsets = [4, 0], sizes = [1, 128], strides = [1, 1]} : vector<5x128xf32> to vector<1x128xf32>
    %287 = vector.extract_strided_slice %285 {offsets = [4, 0], sizes = [1, 128], strides = [1, 1]} : vector<5x128xf32> to vector<1x128xf32>
    %288 = arith.mulf %278, %285 : vector<5x128xf32>
    %289 = vector.broadcast %287 : vector<1x128xf32> to vector<5x128xf32>
    %290 = arith.mulf %278, %289 : vector<5x128xf32>
    %291 = arith.addf %288, %290 : vector<5x128xf32>
    %292 = vector.broadcast %286 : vector<1x128xf32> to vector<5x128xf32>
    %293 = arith.mulf %292, %285 : vector<5x128xf32>
    %294 = arith.addf %291, %293 : vector<5x128xf32>
    %cst_31 = arith.constant dense<0.000000e+00> : vector<128xf32>
    %295 = vector.multi_reduction <add>, %294, %cst_31 [0] : vector<5x128xf32> to vector<128xf32>
    %296 = vector.shape_cast %295 : vector<128xf32> to vector<1x128xf32>
    %cst_32 = arith.constant 9.99999993E-9 : f32
    %297 = vector.broadcast %cst_32 : f32 to vector<1x128xf32>
    %298 = arith.addf %296, %297 : vector<1x128xf32>
    %299 = tpu.reciprocal %298 {approx = true} : vector<1x128xf32> -> vector<1x128xf32>
    %300 = vector.broadcast %299 : vector<1x128xf32> to vector<5x128xf32>
    %301 = arith.mulf %294, %300 : vector<5x128xf32>
    %302 = vector.extract_strided_slice %3 {offsets = [0, 13], sizes = [5, 1], strides = [1, 1]} : vector<5x16xf32> to vector<5x1xf32>
    %303 = vector.extract_strided_slice %13 {offsets = [13, 0], sizes = [1, 128], strides = [1, 1]} : vector<16x128xf32> to vector<1x128xf32>
    %304 = vector.broadcast %302 : vector<5x1xf32> to vector<5x128xf32>
    %305 = vector.broadcast %303 : vector<1x128xf32> to vector<5x128xf32>
    %306 = arith.mulf %304, %305 : vector<5x128xf32>
    %307 = vector.broadcast %18 : vector<5x1xf32> to vector<5x128xf32>
    %308 = arith.addf %306, %307 : vector<5x128xf32>
    %309 = vector.extract_strided_slice %301 {offsets = [4, 0], sizes = [1, 128], strides = [1, 1]} : vector<5x128xf32> to vector<1x128xf32>
    %310 = vector.extract_strided_slice %308 {offsets = [4, 0], sizes = [1, 128], strides = [1, 1]} : vector<5x128xf32> to vector<1x128xf32>
    %311 = arith.mulf %301, %308 : vector<5x128xf32>
    %312 = vector.broadcast %310 : vector<1x128xf32> to vector<5x128xf32>
    %313 = arith.mulf %301, %312 : vector<5x128xf32>
    %314 = arith.addf %311, %313 : vector<5x128xf32>
    %315 = vector.broadcast %309 : vector<1x128xf32> to vector<5x128xf32>
    %316 = arith.mulf %315, %308 : vector<5x128xf32>
    %317 = arith.addf %314, %316 : vector<5x128xf32>
    %cst_33 = arith.constant dense<0.000000e+00> : vector<128xf32>
    %318 = vector.multi_reduction <add>, %317, %cst_33 [0] : vector<5x128xf32> to vector<128xf32>
    %319 = vector.shape_cast %318 : vector<128xf32> to vector<1x128xf32>
    %cst_34 = arith.constant 9.99999993E-9 : f32
    %320 = vector.broadcast %cst_34 : f32 to vector<1x128xf32>
    %321 = arith.addf %319, %320 : vector<1x128xf32>
    %322 = tpu.reciprocal %321 {approx = true} : vector<1x128xf32> -> vector<1x128xf32>
    %323 = vector.broadcast %322 : vector<1x128xf32> to vector<5x128xf32>
    %324 = arith.mulf %317, %323 : vector<5x128xf32>
    %325 = vector.extract_strided_slice %3 {offsets = [0, 14], sizes = [5, 1], strides = [1, 1]} : vector<5x16xf32> to vector<5x1xf32>
    %326 = vector.extract_strided_slice %13 {offsets = [14, 0], sizes = [1, 128], strides = [1, 1]} : vector<16x128xf32> to vector<1x128xf32>
    %327 = vector.broadcast %325 : vector<5x1xf32> to vector<5x128xf32>
    %328 = vector.broadcast %326 : vector<1x128xf32> to vector<5x128xf32>
    %329 = arith.mulf %327, %328 : vector<5x128xf32>
    %330 = vector.broadcast %18 : vector<5x1xf32> to vector<5x128xf32>
    %331 = arith.addf %329, %330 : vector<5x128xf32>
    %332 = vector.extract_strided_slice %324 {offsets = [4, 0], sizes = [1, 128], strides = [1, 1]} : vector<5x128xf32> to vector<1x128xf32>
    %333 = vector.extract_strided_slice %331 {offsets = [4, 0], sizes = [1, 128], strides = [1, 1]} : vector<5x128xf32> to vector<1x128xf32>
    %334 = arith.mulf %324, %331 : vector<5x128xf32>
    %335 = vector.broadcast %333 : vector<1x128xf32> to vector<5x128xf32>
    %336 = arith.mulf %324, %335 : vector<5x128xf32>
    %337 = arith.addf %334, %336 : vector<5x128xf32>
    %338 = vector.broadcast %332 : vector<1x128xf32> to vector<5x128xf32>
    %339 = arith.mulf %338, %331 : vector<5x128xf32>
    %340 = arith.addf %337, %339 : vector<5x128xf32>
    %cst_35 = arith.constant dense<0.000000e+00> : vector<128xf32>
    %341 = vector.multi_reduction <add>, %340, %cst_35 [0] : vector<5x128xf32> to vector<128xf32>
    %342 = vector.shape_cast %341 : vector<128xf32> to vector<1x128xf32>
    %cst_36 = arith.constant 9.99999993E-9 : f32
    %343 = vector.broadcast %cst_36 : f32 to vector<1x128xf32>
    %344 = arith.addf %342, %343 : vector<1x128xf32>
    %345 = tpu.reciprocal %344 {approx = true} : vector<1x128xf32> -> vector<1x128xf32>
    %346 = vector.broadcast %345 : vector<1x128xf32> to vector<5x128xf32>
    %347 = arith.mulf %340, %346 : vector<5x128xf32>
    %348 = vector.extract_strided_slice %3 {offsets = [0, 15], sizes = [5, 1], strides = [1, 1]} : vector<5x16xf32> to vector<5x1xf32>
    %349 = vector.extract_strided_slice %13 {offsets = [15, 0], sizes = [1, 128], strides = [1, 1]} : vector<16x128xf32> to vector<1x128xf32>
    %350 = vector.broadcast %348 : vector<5x1xf32> to vector<5x128xf32>
    %351 = vector.broadcast %349 : vector<1x128xf32> to vector<5x128xf32>
    %352 = arith.mulf %350, %351 : vector<5x128xf32>
    %353 = vector.broadcast %18 : vector<5x1xf32> to vector<5x128xf32>
    %354 = arith.addf %352, %353 : vector<5x128xf32>
    %355 = vector.extract_strided_slice %347 {offsets = [4, 0], sizes = [1, 128], strides = [1, 1]} : vector<5x128xf32> to vector<1x128xf32>
    %356 = vector.extract_strided_slice %354 {offsets = [4, 0], sizes = [1, 128], strides = [1, 1]} : vector<5x128xf32> to vector<1x128xf32>
    %357 = arith.mulf %347, %354 : vector<5x128xf32>
    %358 = vector.broadcast %356 : vector<1x128xf32> to vector<5x128xf32>
    %359 = arith.mulf %347, %358 : vector<5x128xf32>
    %360 = arith.addf %357, %359 : vector<5x128xf32>
    %361 = vector.broadcast %355 : vector<1x128xf32> to vector<5x128xf32>
    %362 = arith.mulf %361, %354 : vector<5x128xf32>
    %363 = arith.addf %360, %362 : vector<5x128xf32>
    %cst_37 = arith.constant dense<0.000000e+00> : vector<128xf32>
    %364 = vector.multi_reduction <add>, %363, %cst_37 [0] : vector<5x128xf32> to vector<128xf32>
    %365 = vector.shape_cast %364 : vector<128xf32> to vector<1x128xf32>
    %cst_38 = arith.constant 9.99999993E-9 : f32
    %366 = vector.broadcast %cst_38 : f32 to vector<1x128xf32>
    %367 = arith.addf %365, %366 : vector<1x128xf32>
    %368 = tpu.reciprocal %367 {approx = true} : vector<1x128xf32> -> vector<1x128xf32>
    %369 = vector.broadcast %368 : vector<1x128xf32> to vector<5x128xf32>
    %370 = arith.mulf %363, %369 : vector<5x128xf32>
    %cst_39 = arith.constant dense<0.000000e+00> : vector<128xf32>
    %371 = vector.multi_reduction <add>, %370, %cst_39 [0] : vector<5x128xf32> to vector<128xf32>
    %372 = vector.shape_cast %371 : vector<128xf32> to vector<1x128xf32>
    %cst_40 = arith.constant 9.99999993E-9 : f32
    %373 = vector.broadcast %cst_40 : f32 to vector<1x128xf32>
    %374 = arith.addf %372, %373 : vector<1x128xf32>
    %375 = vector.broadcast %374 : vector<1x128xf32> to vector<5x128xf32>
    %376 = arith.divf %370, %375 : vector<5x128xf32>
    %377 = vector.extract_strided_slice %376 {offsets = [4, 0], sizes = [1, 128], strides = [1, 1]} : vector<5x128xf32> to vector<1x128xf32>
    %cst_41 = arith.constant 1.000000e-01 : f32
    %378 = vector.broadcast %cst_41 : f32 to vector<1x128xf32>
    %379 = arith.mulf %378, %377 : vector<1x128xf32>
    %380 = vector.extract_strided_slice %376 {offsets = [0, 0], sizes = [4, 128], strides = [1, 1]} : vector<5x128xf32> to vector<4x128xf32>
    %381 = vector.broadcast %379 : vector<1x128xf32> to vector<4x128xf32>
    %382 = arith.addf %380, %381 : vector<4x128xf32>
    %c0_42 = arith.constant 0 : index
    %c0_43 = arith.constant 0 : index
    %383 = vector.load %arg5[%c0_42, %c0_43] : memref<4x128xf32, #tpu.memory_space<vmem>>, vector<4x128xf32>
    tpu.vector_store %arg5[%c0_42, %c0_43], %382 {strides = array<i32>} : memref<4x128xf32, #tpu.memory_space<vmem>>, vector<4x128xf32>,
    return
  }
  func.func @transform_0(%arg0: i32) -> (i32, i32) {
    %c0_i32 = arith.constant 0 : i32
    %c0_i32_0 = arith.constant 0 : i32
    return %arg0, %c0_i32 : i32, i32
  }
  func.func @transform_1(%arg0: i32) -> (i32, i32) {
    %c0_i32 = arith.constant 0 : i32
    %c0_i32_0 = arith.constant 0 : i32
    %c0_i32_1 = arith.constant 0 : i32
    return %c0_i32, %c0_i32_0 : i32, i32
  }
  func.func @transform_2(%arg0: i32) -> (i32, i32) {
    %c0_i32 = arith.constant 0 : i32
    %c0_i32_0 = arith.constant 0 : i32
    %c0_i32_1 = arith.constant 0 : i32
    return %c0_i32, %c0_i32_0 : i32, i32
  }
  func.func @transform_3(%arg0: i32) -> (i32, i32) {
    %c0_i32 = arith.constant 0 : i32
    %c0_i32_0 = arith.constant 0 : i32
    %c0_i32_1 = arith.constant 0 : i32
    return %c0_i32, %c0_i32_0 : i32, i32
  }
  func.func @transform_4(%arg0: i32) -> (i32, i32) {
    %c0_i32 = arith.constant 0 : i32
    %c0_i32_0 = arith.constant 0 : i32
    return %c0_i32, %arg0 : i32, i32
  }
}

</mosaic_0001>

<llo_original>
// kernel: tpu_custom_call.1
$region0: #{tpu_custom_call.1}
  #allocation0 [shape = 'u32[]', space=smem, size = 0x4, offset = 0x4, fixed_abs, tag = 'smem constant byte address 0x4 - core index']
  #allocation1 [shape = 'u32[144,128]{1,0:T(1,128)}', space=vmem, size = 0x12000, scoped, tag = 'internal scratch']
  %s0 = inlined_call_operand.vmem [shape: f32[128,33], index: 0, kind: input, shape index: {}]
  %s1 = inlined_call_operand.vmem [shape: f32[16,33], index: 1, kind: input, shape index: {}]
  %s2 = inlined_call_operand.vmem [shape: f32[16,1], index: 2, kind: input, shape index: {}]
  %s3 = inlined_call_operand.vmem [shape: f32[5,16], index: 3, kind: input, shape index: {}]
  %s4 = inlined_call_operand.hbm [shape: f32[4,128], index: 4, kind: output, shape index: {}]
  %s5 = sld [smem:[#allocation0]]
  $region26: #{tpu_custom_call.1} parent=0
    _
  %s7 = ssub.s32 1, %s5
  %s8 = scalar_select 0, %s7, %s5
  $region1: #{tpu_custom_call.1} parent=0
    #allocation2 [shape = 'u8[2048]{0}', space=vmem, size = 0x800, scoped, tag = 'output window, operand 0, single buffered']
    #allocation3 [shape = 's32[1]{0}', space=sflag, size = 0x4, scoped, tag = 'scoped memory for tpu_custom_call.1']
    %9 = vsyncpa [#allocation3], 0
    // Predicated region
    $region2: #{tpu_custom_call.1} parent=1 // pred_check
      _
    $region3: #{tpu_custom_call.1} parent=1 // pred_check_branch
      %11 = sbr.rel (0) target = $region5
    $region4: #{tpu_custom_call.1} parent=1 // pred_region
      _
    $region5: #{tpu_custom_call.1} parent=1 // pred_fallthru
      _
    // Predicated region
    $region6: #{tpu_custom_call.1} parent=1 // pred_check
      _
    $region7: #{tpu_custom_call.1} parent=1 // pred_check_branch
      %13 = sbr.rel (0) target = $region9
    $region8: #{tpu_custom_call.1} parent=1 // pred_region
      _
    $region9: #{tpu_custom_call.1} parent=1 // pred_fallthru
      _
    // Predicated region
    $region10: #{tpu_custom_call.1} parent=1 // pred_check
      _
    $region11: #{tpu_custom_call.1} parent=1 // pred_check_branch
      %15 = sbr.rel (0) target = $region13
    $region12: #{tpu_custom_call.1} parent=1 // pred_region
      _
    $region13: #{tpu_custom_call.1} parent=1 // pred_fallthru
      _
    // Predicated region
    $region14: #{tpu_custom_call.1} parent=1 // pred_check
      _
    $region15: #{tpu_custom_call.1} parent=1 // pred_check_branch
      %17 = sbr.rel (0) target = $region17
    $region16: #{tpu_custom_call.1} parent=1 // pred_region
      _
    $region17: #{tpu_custom_call.1} parent=1 // pred_fallthru
      _
    %v18 = vld [vmem:[%s0] sm:$0xff]
    %v19 = vld [vmem:[%s0 + $0x8] sm:$0xff]
    %v20 = vld [vmem:[%s0 + $0x10] sm:$0xff]
    %v21 = vld [vmem:[%s0 + $0x18] sm:$0xff]
    %v22 = vld [vmem:[%s0 + $0x20] sm:$0xff]
    %v23 = vld [vmem:[%s0 + $0x28] sm:$0xff]
    %v24 = vld [vmem:[%s0 + $0x30] sm:$0xff]
    %v25 = vld [vmem:[%s0 + $0x38] sm:$0xff]
    %v26 = vld [vmem:[%s0 + $0x40] sm:$0xff]
    %v27 = vld [vmem:[%s0 + $0x48] sm:$0xff]
    %v28 = vld [vmem:[%s0 + $0x50] sm:$0xff]
    %v29 = vld [vmem:[%s0 + $0x58] sm:$0xff]
    %v30 = vld [vmem:[%s0 + $0x60] sm:$0xff]
    %v31 = vld [vmem:[%s0 + $0x68] sm:$0xff]
    %v32 = vld [vmem:[%s0 + $0x70] sm:$0xff]
    %v33 = vld [vmem:[%s0 + $0x78] sm:$0xff]
    %v34 = vld [vmem:[%s1] sm:$0xff]
    %v35 = vld [vmem:[%s1 + $0x8] sm:$0xff]
    %v36 = vld [vmem:[%s2] sm:$0xff]
    %v37 = vld [vmem:[%s2 + $0x8] sm:$0xff]
    %v38 = vld [vmem:[%s3] sm:$0x1f]
    %vm39 = vcmask 269312
    %v41 = vsel %vm39, %v34, 0
    %v44 = vsel %vm39, %v35, 0
    %v47 = vsel %vm39, %v18, 0
    %v50 = vsel %vm39, %v19, 0
    %v53 = vsel %vm39, %v20, 0
    %v56 = vsel %vm39, %v21, 0
    %v59 = vsel %vm39, %v22, 0
    %v62 = vsel %vm39, %v23, 0
    %v65 = vsel %vm39, %v24, 0
    %v68 = vsel %vm39, %v25, 0
    %v71 = vsel %vm39, %v26, 0
    %v74 = vsel %vm39, %v27, 0
    %v77 = vsel %vm39, %v28, 0
    %v80 = vsel %vm39, %v29, 0
    %v83 = vsel %vm39, %v30, 0
    %v86 = vsel %vm39, %v31, 0
    %v89 = vsel %vm39, %v32, 0
    %v92 = vsel %vm39, %v33, 0
    %94 = vmatprep.subr.mxu0 0.0
    %95 = vmatpush1.xpose.msra.mxu0 %v92
    %96 = vmatprep.subr.mxu0 0.0
    %97 = vmatpush1.xpose.msra.mxu0 %v89
    %98 = vmatprep.subr.mxu0 0.0
    %99 = vmatpush1.xpose.msra.mxu0 %v86
    %100 = vmatprep.subr.mxu0 0.0
    %101 = vmatpush1.xpose.msra.mxu0 %v83
    %102 = vmatprep.subr.mxu0 0.0
    %103 = vmatpush1.xpose.msra.mxu0 %v80
    %104 = vmatprep.subr.mxu0 0.0
    %105 = vmatpush1.xpose.msra.mxu0 %v77
    %106 = vmatprep.subr.mxu0 0.0
    %107 = vmatpush1.xpose.msra.mxu0 %v74
    %108 = vmatprep.subr.mxu0 0.0
    %109 = vmatpush1.xpose.msra.mxu0 %v71
    %110 = vmatprep.subr.mxu0 0.0
    %111 = vmatpush1.xpose.msra.mxu0 %v68
    %112 = vmatprep.subr.mxu0 0.0
    %113 = vmatpush1.xpose.msra.mxu0 %v65
    %114 = vmatprep.subr.mxu0 0.0
    %115 = vmatpush1.xpose.msra.mxu0 %v62
    %116 = vmatprep.subr.mxu0 0.0
    %117 = vmatpush1.xpose.msra.mxu0 %v59
    %118 = vmatprep.subr.mxu0 0.0
    %119 = vmatpush1.xpose.msra.mxu0 %v56
    %120 = vmatprep.subr.mxu0 0.0
    %121 = vmatpush1.xpose.msra.mxu0 %v53
    %122 = vmatprep.subr.mxu0 0.0
    %123 = vmatpush1.xpose.msra.mxu0 %v50
    %124 = vmatprep.subr.mxu0 0.0
    %125 = vmatpush1.xpose.msra.mxu0 %v47
    %126 = vmatprep.subr.mxu0 0.0
    %127 = vmatpush2.xpose.msra.mxu0 0.0
    %128 = vmatprep.subr.mxu0 0.0
    %129 = vmatpush2.xpose.msra.mxu0 0.0
    %130 = vmatprep.subr.mxu0 0.0
    %131 = vmatpush2.xpose.msra.mxu0 0.0
    %132 = vmatprep.subr.mxu0 0.0
    %133 = vmatpush2.xpose.msra.mxu0 0.0
    %134 = vmatprep.subr.mxu0 0.0
    %135 = vmatpush2.xpose.msra.mxu0 0.0
    %136 = vmatprep.subr.mxu0 0.0
    %137 = vmatpush2.xpose.msra.mxu0 0.0
    %138 = vmatprep.subr.mxu0 0.0
    %139 = vmatpush2.xpose.msra.mxu0 0.0
    %140 = vmatprep.subr.mxu0 0.0
    %141 = vmatpush2.xpose.msra.mxu0 0.0
    %142 = vmatprep.subr.mxu0 0.0
    %143 = vmatpush2.xpose.msra.mxu0 0.0
    %144 = vmatprep.subr.mxu0 0.0
    %145 = vmatpush2.xpose.msra.mxu0 0.0
    %146 = vmatprep.subr.mxu0 0.0
    %147 = vmatpush2.xpose.msra.mxu0 0.0
    %148 = vmatprep.subr.mxu0 0.0
    %149 = vmatpush2.xpose.msra.mxu0 0.0
    %150 = vmatprep.subr.mxu0 0.0
    %151 = vmatpush2.xpose.msra.mxu0 0.0
    %152 = vmatprep.subr.mxu0 0.0
    %153 = vmatpush2.xpose.msra.mxu0 0.0
    %154 = vmatprep.subr.mxu0 0.0
    %155 = vmatpush2.xpose.msra.mxu0 0.0
    %156 = vmatprep.subr.mxu0 0.0
    %157 = vmatpush2.xpose.msra.mxu0 0.0
    %158 = vmatprep.mubr.f32.mxu0 0.0
    %159 = vmatmul.mubr.f32.gmra.mxu0 %v41
    %v160 = vpop.f32.mrf.mxu0
    %v161 = vadd.f32 0.0, %v160
    %v162 = vpop.f32.mrf.mxu0
    %163 = vmatprep.mubr.f32.mxu0 0.0
    %164 = vmatmul.mubr.f32.gmra.mxu0 %v44
    %v165 = vpop.f32.mrf.mxu0
    %v166 = vadd.f32 0.0, %v165
    %v167 = vpop.f32.mrf.mxu0
    %168 = vdwg.mxu0
    %v169 = vmul.f32 %v161, 1.442695
    %v170 = vpow.pop %v169
    %v171 = vmul.f32 %v166, 1.442695
    %v172 = vpow.pop %v171
    %174 = vset.pattern.permute.xlu0 0
    %175 = vperm.xlu0 %174, %v36
    %v176 = vpop.permute.xlu0 %175
    %179 = vset.pattern.permute.xlu0 0
    %180 = vperm.xlu0 %179, %v37
    %v181 = vpop.permute.xlu0 %180
    %v183 = vmul.f32 %v176, %v170
    %v184 = vmul.f32 %v181, %v172
    %v185 = vmax.f32 %v183, %v184
    %v186 = vrot.slane %v185, 4
    %v187 = vmax.f32 %v185, %v186
    %v188 = vrot.slane %v187, 2
    %v189 = vmax.f32 %v187, %v188
    %v190 = vrot.slane %v189, 1
    %v191 = vmax.f32 %v189, %v190
    %v192 = vadd.f32 %v191, 0.0001
    %v193 = vrcp.pop %v192
    %v194 = vmul.f32 %v183, %v193
    %v195 = vmul.f32 %v184, %v193
    %v196 = vlaneseq
    %v197 = vshrl.u32 %v196, 7
    %vm198 = vcmp.eq.s32.totalorder %v197, 4
    %v199 = vsel %vm198, 1, 0
    %v200 = vcvt.s32.f32 %v199
    %202 = vset.pattern.permute.xlu0 0
    %203 = vperm.xlu0 %202, %v38
    %v204 = vpop.permute.xlu0 %203
    %v206 = vlaneseq
    %v207 = vshrl.u32 %v206, 7
    %v208 = vsub.s32 0, %v207
    %v209 = vrot.slane %v194, %v208
    %v210 = vmul.f32 %v204, %v209
    %v211 = vadd.f32 %v210, %v200
    %212 = vset.pattern.permute.xlu0 1
    %213 = vperm.xlu0 %212, %v38
    %v214 = vpop.permute.xlu0 %213
    %v216 = vlaneseq
    %v217 = vshrl.u32 %v216, 7
    %v218 = vsub.s32 1, %v217
    %v219 = vrot.slane %v194, %v218
    %v220 = vmul.f32 %v214, %v219
    %v221 = vadd.f32 %v220, %v200
    %v222 = vmul.f32 %v211, %v221
    %v223 = vlaneseq
    %v224 = vshrl.u32 %v223, 7
    %v225 = vsub.s32 4, %v224
    %v226 = vrot.slane %v221, %v225
    %v227 = vmul.f32 %v211, %v226
    %v228 = vadd.f32 %v222, %v227
    %v229 = vlaneseq
    %v230 = vshrl.u32 %v229, 7
    %v231 = vsub.s32 4, %v230
    %v232 = vrot.slane %v211, %v231
    %v233 = vmul.f32 %v232, %v221
    %v234 = vadd.f32 %v228, %v233
    %vm235 = vcmask 1044480
    %v236 = vsel %vm235, %v234, 0.0
    %v237 = vrot.slane %v236, 4
    %v238 = vadd.f32 %v236, %v237
    %v239 = vrot.slane %v238, 2
    %v240 = vadd.f32 %v238, %v239
    %v241 = vrot.slane %v240, 1
    %v242 = vadd.f32 %v240, %v241
    %v243 = vadd.f32 %v242, 1e-08
    %v244 = vrcp.pop %v243
    %v245 = vmul.f32 %v234, %v244
    %246 = vset.pattern.permute.xlu0 2
    %247 = vperm.xlu0 %246, %v38
    %v248 = vpop.permute.xlu0 %247
    %v250 = vlaneseq
    %v251 = vshrl.u32 %v250, 7
    %v252 = vsub.s32 2, %v251
    %v253 = vrot.slane %v194, %v252
    %v254 = vmul.f32 %v248, %v253
    %v255 = vadd.f32 %v254, %v200
    %v256 = vmul.f32 %v245, %v255
    %v257 = vlaneseq
    %v258 = vshrl.u32 %v257, 7
    %v259 = vsub.s32 4, %v258
    %v260 = vrot.slane %v255, %v259
    %v261 = vmul.f32 %v245, %v260
    %v262 = vadd.f32 %v256, %v261
    %v263 = vlaneseq
    %v264 = vshrl.u32 %v263, 7
    %v265 = vsub.s32 4, %v264
    %v266 = vrot.slane %v245, %v265
    %v267 = vmul.f32 %v266, %v255
    %v268 = vadd.f32 %v262, %v267
    %v269 = vsel %vm235, %v268, 0.0
    %v270 = vrot.slane %v269, 4
    %v271 = vadd.f32 %v269, %v270
    %v272 = vrot.slane %v271, 2
    %v273 = vadd.f32 %v271, %v272
    %v274 = vrot.slane %v273, 1
    %v275 = vadd.f32 %v273, %v274
    %v276 = vadd.f32 %v275, 1e-08
    %v277 = vrcp.pop %v276
    %v278 = vmul.f32 %v268, %v277
    %279 = vset.pattern.permute.xlu0 3
    %280 = vperm.xlu0 %279, %v38
    %v281 = vpop.permute.xlu0 %280
    %v283 = vlaneseq
    %v284 = vshrl.u32 %v283, 7
    %v285 = vsub.s32 3, %v284
    %v286 = vrot.slane %v194, %v285
    %v287 = vmul.f32 %v281, %v286
    %v288 = vadd.f32 %v287, %v200
    %v289 = vmul.f32 %v278, %v288
    %v290 = vlaneseq
    %v291 = vshrl.u32 %v290, 7
    %v292 = vsub.s32 4, %v291
    %v293 = vrot.slane %v288, %v292
    %v294 = vmul.f32 %v278, %v293
    %v295 = vadd.f32 %v289, %v294
    %v296 = vlaneseq
    %v297 = vshrl.u32 %v296, 7
    %v298 = vsub.s32 4, %v297
    %v299 = vrot.slane %v278, %v298
    %v300 = vmul.f32 %v299, %v288
    %v301 = vadd.f32 %v295, %v300
    %v302 = vsel %vm235, %v301, 0.0
    %v303 = vrot.slane %v302, 4
    %v304 = vadd.f32 %v302, %v303
    %v305 = vrot.slane %v304, 2
    %v306 = vadd.f32 %v304, %v305
    %v307 = vrot.slane %v306, 1
    %v308 = vadd.f32 %v306, %v307
    %v309 = vadd.f32 %v308, 1e-08
    %v310 = vrcp.pop %v309
    %v311 = vmul.f32 %v301, %v310
    %312 = vset.pattern.permute.xlu0 4
    %313 = vperm.xlu0 %312, %v38
    %v314 = vpop.permute.xlu0 %313
    %v316 = vlaneseq
    %v317 = vshrl.u32 %v316, 7
    %v318 = vsub.s32 4, %v317
    %v319 = vrot.slane %v194, %v318
    %v320 = vmul.f32 %v314, %v319
    %v321 = vadd.f32 %v320, %v200
    %v322 = vmul.f32 %v311, %v321
    %v323 = vlaneseq
    %v324 = vshrl.u32 %v323, 7
    %v325 = vsub.s32 4, %v324
    %v326 = vrot.slane %v321, %v325
    %v327 = vmul.f32 %v311, %v326
    %v328 = vadd.f32 %v322, %v327
    %v329 = vlaneseq
    %v330 = vshrl.u32 %v329, 7
    %v331 = vsub.s32 4, %v330
    %v332 = vrot.slane %v311, %v331
    %v333 = vmul.f32 %v332, %v321
    %v334 = vadd.f32 %v328, %v333
    %v335 = vsel %vm235, %v334, 0.0
    %v336 = vrot.slane %v335, 4
    %v337 = vadd.f32 %v335, %v336
    %v338 = vrot.slane %v337, 2
    %v339 = vadd.f32 %v337, %v338
    %v340 = vrot.slane %v339, 1
    %v341 = vadd.f32 %v339, %v340
    %v342 = vadd.f32 %v341, 1e-08
    %v343 = vrcp.pop %v342
    %v344 = vmul.f32 %v334, %v343
    %345 = vset.pattern.permute.xlu0 5
    %346 = vperm.xlu0 %345, %v38
    %v347 = vpop.permute.xlu0 %346
    %v349 = vlaneseq
    %v350 = vshrl.u32 %v349, 7
    %v351 = vsub.s32 5, %v350
    %v352 = vrot.slane %v194, %v351
    %v353 = vmul.f32 %v347, %v352
    %v354 = vadd.f32 %v353, %v200
    %v355 = vmul.f32 %v344, %v354
    %v356 = vlaneseq
    %v357 = vshrl.u32 %v356, 7
    %v358 = vsub.s32 4, %v357
    %v359 = vrot.slane %v354, %v358
    %v360 = vmul.f32 %v344, %v359
    %v361 = vadd.f32 %v355, %v360
    %v362 = vlaneseq
    %v363 = vshrl.u32 %v362, 7
    %v364 = vsub.s32 4, %v363
    %v365 = vrot.slane %v344, %v364
    %v366 = vmul.f32 %v365, %v354
    %v367 = vadd.f32 %v361, %v366
    %v368 = vsel %vm235, %v367, 0.0
    %v369 = vrot.slane %v368, 4
    %v370 = vadd.f32 %v368, %v369
    %v371 = vrot.slane %v370, 2
    %v372 = vadd.f32 %v370, %v371
    %v373 = vrot.slane %v372, 1
    %v374 = vadd.f32 %v372, %v373
    %v375 = vadd.f32 %v374, 1e-08
    %v376 = vrcp.pop %v375
    %v377 = vmul.f32 %v367, %v376
    %378 = vset.pattern.permute.xlu0 6
    %379 = vperm.xlu0 %378, %v38
    %v380 = vpop.permute.xlu0 %379
    %v382 = vlaneseq
    %v383 = vshrl.u32 %v382, 7
    %v384 = vsub.s32 6, %v383
    %v385 = vrot.slane %v194, %v384
    %v386 = vmul.f32 %v380, %v385
    %v387 = vadd.f32 %v386, %v200
    %v388 = vmul.f32 %v377, %v387
    %v389 = vlaneseq
    %v390 = vshrl.u32 %v389, 7
    %v391 = vsub.s32 4, %v390
    %v392 = vrot.slane %v387, %v391
    %v393 = vmul.f32 %v377, %v392
    %v394 = vadd.f32 %v388, %v393
    %v395 = vlaneseq
    %v396 = vshrl.u32 %v395, 7
    %v397 = vsub.s32 4, %v396
    %v398 = vrot.slane %v377, %v397
    %v399 = vmul.f32 %v398, %v387
    %v400 = vadd.f32 %v394, %v399
    %v401 = vsel %vm235, %v400, 0.0
    %v402 = vrot.slane %v401, 4
    %v403 = vadd.f32 %v401, %v402
    %v404 = vrot.slane %v403, 2
    %v405 = vadd.f32 %v403, %v404
    %v406 = vrot.slane %v405, 1
    %v407 = vadd.f32 %v405, %v406
    %v408 = vadd.f32 %v407, 1e-08
    %v409 = vrcp.pop %v408
    %v410 = vmul.f32 %v400, %v409
    %411 = vset.pattern.permute.xlu0 7
    %412 = vperm.xlu0 %411, %v38
    %v413 = vpop.permute.xlu0 %412
    %v415 = vlaneseq
    %v416 = vshrl.u32 %v415, 7
    %v417 = vsub.s32 7, %v416
    %v418 = vrot.slane %v194, %v417
    %v419 = vmul.f32 %v413, %v418
    %v420 = vadd.f32 %v419, %v200
    %v421 = vmul.f32 %v410, %v420
    %v422 = vlaneseq
    %v423 = vshrl.u32 %v422, 7
    %v424 = vsub.s32 4, %v423
    %v425 = vrot.slane %v420, %v424
    %v426 = vmul.f32 %v410, %v425
    %v427 = vadd.f32 %v421, %v426
    %v428 = vlaneseq
    %v429 = vshrl.u32 %v428, 7
    %v430 = vsub.s32 4, %v429
    %v431 = vrot.slane %v410, %v430
    %v432 = vmul.f32 %v431, %v420
    %v433 = vadd.f32 %v427, %v432
    %v434 = vsel %vm235, %v433, 0.0
    %v435 = vrot.slane %v434, 4
    %v436 = vadd.f32 %v434, %v435
    %v437 = vrot.slane %v436, 2
    %v438 = vadd.f32 %v436, %v437
    %v439 = vrot.slane %v438, 1
    %v440 = vadd.f32 %v438, %v439
    %v441 = vadd.f32 %v440, 1e-08
    %v442 = vrcp.pop %v441
    %v443 = vmul.f32 %v433, %v442
    %444 = vset.pattern.permute.xlu0 8
    %445 = vperm.xlu0 %444, %v38
    %v446 = vpop.permute.xlu0 %445
    %v448 = vlaneseq
    %v449 = vshrl.u32 %v448, 7
    %v450 = vsub.s32 0, %v449
    %v451 = vrot.slane %v195, %v450
    %v452 = vmul.f32 %v446, %v451
    %v453 = vadd.f32 %v452, %v200
    %v454 = vmul.f32 %v443, %v453
    %v455 = vlaneseq
    %v456 = vshrl.u32 %v455, 7
    %v457 = vsub.s32 4, %v456
    %v458 = vrot.slane %v453, %v457
    %v459 = vmul.f32 %v443, %v458
    %v460 = vadd.f32 %v454, %v459
    %v461 = vlaneseq
    %v462 = vshrl.u32 %v461, 7
    %v463 = vsub.s32 4, %v462
    %v464 = vrot.slane %v443, %v463
    %v465 = vmul.f32 %v464, %v453
    %v466 = vadd.f32 %v460, %v465
    %v467 = vsel %vm235, %v466, 0.0
    %v468 = vrot.slane %v467, 4
    %v469 = vadd.f32 %v467, %v468
    %v470 = vrot.slane %v469, 2
    %v471 = vadd.f32 %v469, %v470
    %v472 = vrot.slane %v471, 1
    %v473 = vadd.f32 %v471, %v472
    %v474 = vadd.f32 %v473, 1e-08
    %v475 = vrcp.pop %v474
    %v476 = vmul.f32 %v466, %v475
    %477 = vset.pattern.permute.xlu0 9
    %478 = vperm.xlu0 %477, %v38
    %v479 = vpop.permute.xlu0 %478
    %v481 = vlaneseq
    %v482 = vshrl.u32 %v481, 7
    %v483 = vsub.s32 1, %v482
    %v484 = vrot.slane %v195, %v483
    %v485 = vmul.f32 %v479, %v484
    %v486 = vadd.f32 %v485, %v200
    %v487 = vmul.f32 %v476, %v486
    %v488 = vlaneseq
    %v489 = vshrl.u32 %v488, 7
    %v490 = vsub.s32 4, %v489
    %v491 = vrot.slane %v486, %v490
    %v492 = vmul.f32 %v476, %v491
    %v493 = vadd.f32 %v487, %v492
    %v494 = vlaneseq
    %v495 = vshrl.u32 %v494, 7
    %v496 = vsub.s32 4, %v495
    %v497 = vrot.slane %v476, %v496
    %v498 = vmul.f32 %v497, %v486
    %v499 = vadd.f32 %v493, %v498
    %v500 = vsel %vm235, %v499, 0.0
    %v501 = vrot.slane %v500, 4
    %v502 = vadd.f32 %v500, %v501
    %v503 = vrot.slane %v502, 2
    %v504 = vadd.f32 %v502, %v503
    %v505 = vrot.slane %v504, 1
    %v506 = vadd.f32 %v504, %v505
    %v507 = vadd.f32 %v506, 1e-08
    %v508 = vrcp.pop %v507
    %v509 = vmul.f32 %v499, %v508
    %510 = vset.pattern.permute.xlu0 10
    %511 = vperm.xlu0 %510, %v38
    %v512 = vpop.permute.xlu0 %511
    %v514 = vlaneseq
    %v515 = vshrl.u32 %v514, 7
    %v516 = vsub.s32 2, %v515
    %v517 = vrot.slane %v195, %v516
    %v518 = vmul.f32 %v512, %v517
    %v519 = vadd.f32 %v518, %v200
    %v520 = vmul.f32 %v509, %v519
    %v521 = vlaneseq
    %v522 = vshrl.u32 %v521, 7
    %v523 = vsub.s32 4, %v522
    %v524 = vrot.slane %v519, %v523
    %v525 = vmul.f32 %v509, %v524
    %v526 = vadd.f32 %v520, %v525
    %v527 = vlaneseq
    %v528 = vshrl.u32 %v527, 7
    %v529 = vsub.s32 4, %v528
    %v530 = vrot.slane %v509, %v529
    %v531 = vmul.f32 %v530, %v519
    %v532 = vadd.f32 %v526, %v531
    %v533 = vsel %vm235, %v532, 0.0
    %v534 = vrot.slane %v533, 4
    %v535 = vadd.f32 %v533, %v534
    %v536 = vrot.slane %v535, 2
    %v537 = vadd.f32 %v535, %v536
    %v538 = vrot.slane %v537, 1
    %v539 = vadd.f32 %v537, %v538
    %v540 = vadd.f32 %v539, 1e-08
    %v541 = vrcp.pop %v540
    %v542 = vmul.f32 %v532, %v541
    %543 = vset.pattern.permute.xlu0 11
    %544 = vperm.xlu0 %543, %v38
    %v545 = vpop.permute.xlu0 %544
    %v547 = vlaneseq
    %v548 = vshrl.u32 %v547, 7
    %v549 = vsub.s32 3, %v548
    %v550 = vrot.slane %v195, %v549
    %v551 = vmul.f32 %v545, %v550
    %v552 = vadd.f32 %v551, %v200
    %v553 = vmul.f32 %v542, %v552
    %v554 = vlaneseq
    %v555 = vshrl.u32 %v554, 7
    %v556 = vsub.s32 4, %v555
    %v557 = vrot.slane %v552, %v556
    %v558 = vmul.f32 %v542, %v557
    %v559 = vadd.f32 %v553, %v558
    %v560 = vlaneseq
    %v561 = vshrl.u32 %v560, 7
    %v562 = vsub.s32 4, %v561
    %v563 = vrot.slane %v542, %v562
    %v564 = vmul.f32 %v563, %v552
    %v565 = vadd.f32 %v559, %v564
    %v566 = vsel %vm235, %v565, 0.0
    %v567 = vrot.slane %v566, 4
    %v568 = vadd.f32 %v566, %v567
    %v569 = vrot.slane %v568, 2
    %v570 = vadd.f32 %v568, %v569
    %v571 = vrot.slane %v570, 1
    %v572 = vadd.f32 %v570, %v571
    %v573 = vadd.f32 %v572, 1e-08
    %v574 = vrcp.pop %v573
    %v575 = vmul.f32 %v565, %v574
    %576 = vset.pattern.permute.xlu0 12
    %577 = vperm.xlu0 %576, %v38
    %v578 = vpop.permute.xlu0 %577
    %v580 = vlaneseq
    %v581 = vshrl.u32 %v580, 7
    %v582 = vsub.s32 4, %v581
    %v583 = vrot.slane %v195, %v582
    %v584 = vmul.f32 %v578, %v583
    %v585 = vadd.f32 %v584, %v200
    %v586 = vmul.f32 %v575, %v585
    %v587 = vlaneseq
    %v588 = vshrl.u32 %v587, 7
    %v589 = vsub.s32 4, %v588
    %v590 = vrot.slane %v585, %v589
    %v591 = vmul.f32 %v575, %v590
    %v592 = vadd.f32 %v586, %v591
    %v593 = vlaneseq
    %v594 = vshrl.u32 %v593, 7
    %v595 = vsub.s32 4, %v594
    %v596 = vrot.slane %v575, %v595
    %v597 = vmul.f32 %v596, %v585
    %v598 = vadd.f32 %v592, %v597
    %v599 = vsel %vm235, %v598, 0.0
    %v600 = vrot.slane %v599, 4
    %v601 = vadd.f32 %v599, %v600
    %v602 = vrot.slane %v601, 2
    %v603 = vadd.f32 %v601, %v602
    %v604 = vrot.slane %v603, 1
    %v605 = vadd.f32 %v603, %v604
    %v606 = vadd.f32 %v605, 1e-08
    %v607 = vrcp.pop %v606
    %v608 = vmul.f32 %v598, %v607
    %609 = vset.pattern.permute.xlu0 13
    %610 = vperm.xlu0 %609, %v38
    %v611 = vpop.permute.xlu0 %610
    %v613 = vlaneseq
    %v614 = vshrl.u32 %v613, 7
    %v615 = vsub.s32 5, %v614
    %v616 = vrot.slane %v195, %v615
    %v617 = vmul.f32 %v611, %v616
    %v618 = vadd.f32 %v617, %v200
    %v619 = vmul.f32 %v608, %v618
    %v620 = vlaneseq
    %v621 = vshrl.u32 %v620, 7
    %v622 = vsub.s32 4, %v621
    %v623 = vrot.slane %v618, %v622
    %v624 = vmul.f32 %v608, %v623
    %v625 = vadd.f32 %v619, %v624
    %v626 = vlaneseq
    %v627 = vshrl.u32 %v626, 7
    %v628 = vsub.s32 4, %v627
    %v629 = vrot.slane %v608, %v628
    %v630 = vmul.f32 %v629, %v618
    %v631 = vadd.f32 %v625, %v630
    %v632 = vsel %vm235, %v631, 0.0
    %v633 = vrot.slane %v632, 4
    %v634 = vadd.f32 %v632, %v633
    %v635 = vrot.slane %v634, 2
    %v636 = vadd.f32 %v634, %v635
    %v637 = vrot.slane %v636, 1
    %v638 = vadd.f32 %v636, %v637
    %v639 = vadd.f32 %v638, 1e-08
    %v640 = vrcp.pop %v639
    %v641 = vmul.f32 %v631, %v640
    %642 = vset.pattern.permute.xlu0 14
    %643 = vperm.xlu0 %642, %v38
    %v644 = vpop.permute.xlu0 %643
    %v646 = vlaneseq
    %v647 = vshrl.u32 %v646, 7
    %v648 = vsub.s32 6, %v647
    %v649 = vrot.slane %v195, %v648
    %v650 = vmul.f32 %v644, %v649
    %v651 = vadd.f32 %v650, %v200
    %v652 = vmul.f32 %v641, %v651
    %v653 = vlaneseq
    %v654 = vshrl.u32 %v653, 7
    %v655 = vsub.s32 4, %v654
    %v656 = vrot.slane %v651, %v655
    %v657 = vmul.f32 %v641, %v656
    %v658 = vadd.f32 %v652, %v657
    %v659 = vlaneseq
    %v660 = vshrl.u32 %v659, 7
    %v661 = vsub.s32 4, %v660
    %v662 = vrot.slane %v641, %v661
    %v663 = vmul.f32 %v662, %v651
    %v664 = vadd.f32 %v658, %v663
    %v665 = vsel %vm235, %v664, 0.0
    %v666 = vrot.slane %v665, 4
    %v667 = vadd.f32 %v665, %v666
    %v668 = vrot.slane %v667, 2
    %v669 = vadd.f32 %v667, %v668
    %v670 = vrot.slane %v669, 1
    %v671 = vadd.f32 %v669, %v670
    %v672 = vadd.f32 %v671, 1e-08
    %v673 = vrcp.pop %v672
    %v674 = vmul.f32 %v664, %v673
    %675 = vset.pattern.permute.xlu0 15
    %676 = vperm.xlu0 %675, %v38
    %v677 = vpop.permute.xlu0 %676
    %v679 = vlaneseq
    %v680 = vshrl.u32 %v679, 7
    %v681 = vsub.s32 7, %v680
    %v682 = vrot.slane %v195, %v681
    %v683 = vmul.f32 %v677, %v682
    %v684 = vadd.f32 %v683, %v200
    %v685 = vmul.f32 %v674, %v684
    %v686 = vlaneseq
    %v687 = vshrl.u32 %v686, 7
    %v688 = vsub.s32 4, %v687
    %v689 = vrot.slane %v684, %v688
    %v690 = vmul.f32 %v674, %v689
    %v691 = vadd.f32 %v685, %v690
    %v692 = vlaneseq
    %v693 = vshrl.u32 %v692, 7
    %v694 = vsub.s32 4, %v693
    %v695 = vrot.slane %v674, %v694
    %v696 = vmul.f32 %v695, %v684
    %v697 = vadd.f32 %v691, %v696
    %v698 = vsel %vm235, %v697, 0.0
    %v699 = vrot.slane %v698, 4
    %v700 = vadd.f32 %v698, %v699
    %v701 = vrot.slane %v700, 2
    %v702 = vadd.f32 %v700, %v701
    %v703 = vrot.slane %v702, 1
    %v704 = vadd.f32 %v702, %v703
    %v705 = vadd.f32 %v704, 1e-08
    %v706 = vrcp.pop %v705
    %v707 = vmul.f32 %v697, %v706
    %v708 = vsel %vm235, %v707, 0.0
    %v709 = vrot.slane %v708, 4
    %v710 = vadd.f32 %v708, %v709
    %v711 = vrot.slane %v710, 2
    %v712 = vadd.f32 %v710, %v711
    %v713 = vrot.slane %v712, 1
    %v714 = vadd.f32 %v712, %v713
    %v715 = vadd.f32 %v714, 1e-08
    %v716 = vrcp.pop %v715
    %v717 = vmul.f32 %v707, %v716
    %v718 = vmul.f32 %v717, 0.1
    %v719 = vlaneseq
    %v720 = vshrl.u32 %v719, 7
    %v721 = vsub.s32 4, %v720
    %v722 = vrot.slane %v718, %v721
    %v723 = vadd.f32 %v717, %v722
    %724 = vst [vmem:[#allocation2] sm:$0xf] %v723
    // Predicated region
    $region18: #{tpu_custom_call.1} parent=1 // pred_check
      _
    $region19: #{tpu_custom_call.1} parent=1 // pred_check_branch
      %726 = sbr.rel (0) target = $region21
    $region20: #{tpu_custom_call.1} parent=1 // pred_region
      %s728 = ssub.s32 64, 64
      %729 = vsyncadd [#allocation3], %s728
      %s731 = sshll.u32 [#allocation2], 4
      %s732 = int_to_ptr.vmem [resolvable:$true] %s731
      %734 = dma.vmem_to_hbm [thread:$0]  %s732, 64, %s4, [#allocation3]
    $region21: #{tpu_custom_call.1} parent=1 // pred_fallthru
      _
    // Predicated region
    $region22: #{tpu_custom_call.1} parent=1 // pred_check
      _
    $region23: #{tpu_custom_call.1} parent=1 // pred_check_branch
      %736 = sbr.rel (0) target = $region25
    $region24: #{tpu_custom_call.1} parent=1 // pred_region
      %737 = dma.done [#allocation3], 64
    $region25: #{tpu_custom_call.1} parent=1 // pred_fallthru
      _
    %738 = vsyncpa [#allocation3], 1

</llo_original>
